<compile_context>
chip_gen: v5e
topology: v5e:2x2
jax: 0.10.0
libtpu: 0.0.40
codegen_flags: <defaults>
</compile_context>

<pallas_src>
import functools

import jax
import jax.numpy as jnp
from jax import lax
from jax.experimental import pallas as pl
from jax.experimental.pallas import tpu as pltpu

_LANE = 128
_SUBLANE = 8
_MAX_TILE_ROWS = 512  # 512*128*4B = 256 KiB per buffer

# lowbias32 / murmur-style finalizer constants, expressed as int32 values.
_C1 = 0x7FEB352D
_C2 = 0x846CA68B - (1 << 32)
_GOLD = 0x9E3779B9 - (1 << 32)
_SQRT3 = 1.7320508075688772


def _srl(x, n):
    """Logical right shift for int32 (jnp >> is arithmetic on signed ints)."""
    return (x >> n) & jnp.int32((1 << (32 - n)) - 1)


def _hash32(x):
    """Integer mixing (lowbias32): int32 in, well-scrambled int32 out."""
    x = x ^ _srl(x, 16)
    x = x * jnp.int32(_C1)
    x = x ^ _srl(x, 15)
    x = x * jnp.int32(_C2)
    x = x ^ _srl(x, 16)
    return x


def _jitter_kernel(seed_ref, pc_ref, out_ref, *, std, clip, tile_rows):
    i = pl.program_id(0)
    shape = pc_ref.shape  # (tile_rows, 128)

    # Global element index of every slot in this tile -> noise is independent
    # of tiling / grid execution order (safe with "parallel" semantics).
    row = lax.broadcasted_iota(jnp.int32, shape, 0)
    col = lax.broadcasted_iota(jnp.int32, shape, 1)
    idx = (i * tile_rows + row) * _LANE + col

    salt = seed_ref[0] * jnp.int32(_GOLD)
    base = idx * 2 + salt
    h0 = _hash32(base)
    h1 = _hash32(base + 1)

    # Four 16-bit uniforms per element from two 32-bit hashes; sum as ints.
    mask16 = jnp.int32(0xFFFF)
    s = (h0 & mask16) + (h1 & mask16) + _srl(h0, 16) + _srl(h1, 16)

    # CLT: (sum of 4 U[0,1) - 2) * sqrt(3)  ~  N(0, 1), pure VPU work.
    z = (s.astype(jnp.float32) * jnp.float32(1.0 / 65536.0)
         - jnp.float32(2.0)) * jnp.float32(_SQRT3)

    noise = jnp.clip(z * jnp.float32(std), -jnp.float32(clip), jnp.float32(clip))
    out_ref[...] = pc_ref[...] + noise


def _round_up(x, m):
    return ((x + m - 1) // m) * m


def random_jitter(pc, seed, *, std=0.01, clip=0.05):
    """Pallas equivalent of RandomJitter(std, clip).forward(pc).

    pc   : float32 array of shape (3, num_points)
    seed : int array of shape (1,) selecting the noise realization
    """
    if not isinstance(std, float) or std < 0.0:
        raise ValueError('std should be a non-negative float.')
    if not isinstance(clip, float) or clip < 0.0:
        raise ValueError('clip should be a non-negative float.')
    # mirrors check_pc(pc, tensor_dims=2, xyz_only=True)
    if pc.ndim != 2 or pc.shape[0] != 3:
        raise ValueError('pc must have shape (3, num_points).')

    pc = jnp.asarray(pc, jnp.float32)
    in_features, num_points = pc.shape
    total = in_features * num_points

    # Lane-dense (rows, 128) slab, rows a multiple of the 8-sublane tile.
    rows = pl.cdiv(total, _LANE)
    tile_rows = min(_MAX_TILE_ROWS, _round_up(rows, _SUBLANE))
    num_tiles = pl.cdiv(rows, tile_rows)
    padded_rows = num_tiles * tile_rows

    flat = jnp.pad(pc.reshape(-1), (0, padded_rows * _LANE - total))
    slab = flat.reshape(padded_rows, _LANE)
    seed = jnp.asarray(seed, jnp.int32).reshape((1,))

    kernel = functools.partial(
        _jitter_kernel, std=float(std), clip=float(clip), tile_rows=tile_rows)

    out = pl.pallas_call(
        kernel,
        out_shape=jax.ShapeDtypeStruct((padded_rows, _LANE), jnp.float32),
        grid=(num_tiles,),
        in_specs=[
            pl.BlockSpec(memory_space=pltpu.MemorySpace.SMEM),   # seed scalar
            pl.BlockSpec((tile_rows, _LANE), lambda i: (i, 0)),  # pc tile
        ],
        out_specs=pl.BlockSpec((tile_rows, _LANE), lambda i: (i, 0)),
        compiler_params=pltpu.CompilerParams(
            dimension_semantics=("parallel",)),
    )(seed, slab)

    return out.reshape(-1)[:total].reshape(in_features, num_points)


if __name__ == "__main__":
    key = jax.random.PRNGKey(0)
    num_points = 256
    pc = jax.random.normal(key, (3, num_points), dtype=jnp.float32)
    seed = jnp.array([7], dtype=jnp.int32)

    std, clip = 0.01, 0.05
    out = jax.block_until_ready(random_jitter(pc, seed, std=std, clip=clip))

    # sanity checks: shape/dtype preserved, jitter bounded by clip, ~std scale
    assert out.shape == pc.shape and out.dtype == jnp.float32
    delta = out - pc
    assert bool(jnp.all(jnp.abs(delta) <= clip + 1e-6))
    assert bool(jnp.any(jnp.abs(delta) > 0.0))
    emp_std = float(jnp.std(delta))
    assert 0.003 < emp_std < 0.03, emp_std

    print("KERNEL_OK")
</pallas_src>

<mosaic_0001>
module attributes {stable_mosaic.version = 11 : i64} {
  func.func @_jitter_kernel(%arg0: i32, %arg1: memref<1xi32, #tpu.memory_space<smem>>, %arg2: memref<8x128xf32, #tpu.memory_space<vmem>>, %arg3: memref<8x128xf32, #tpu.memory_space<vmem>>) attributes {dimension_semantics = [#tpu.dimension_semantics<parallel>], iteration_bounds = array<i64: 1>, scalar_prefetch = 0 : i64, scratch_operands = 0 : i64, tpu.core_type = #tpu.core_type<tc>, window_params = [{transform_indices = @transform_0, window_bounds = array<i64: 1>}, {transform_indices = @transform_1, window_bounds = array<i64: 8, 128>}, {transform_indices = @transform_2, window_bounds = array<i64: 8, 128>}]} {
    %0 = tpu.iota {dimensions = array<i32: 0>} : vector<8x128xi32>
    %1 = tpu.iota {dimensions = array<i32: 1>} : vector<8x128xi32>
    %c8_i32 = arith.constant 8 : i32
    %2 = arith.muli %arg0, %c8_i32 : i32
    %3 = vector.broadcast %2 : i32 to vector<8x128xi32>
    %4 = arith.addi %3, %0 : vector<8x128xi32>
    %c128_i32 = arith.constant 128 : i32
    %5 = vector.broadcast %c128_i32 : i32 to vector<8x128xi32>
    %6 = arith.muli %4, %5 : vector<8x128xi32>
    %7 = arith.addi %6, %1 : vector<8x128xi32>
    %c0 = arith.constant 0 : index
    %8 = memref.load %arg1[%c0] : memref<1xi32, #tpu.memory_space<smem>>
    %c-1640531527_i32 = arith.constant -1640531527 : i32
    %9 = arith.muli %8, %c-1640531527_i32 : i32
    %c2_i32 = arith.constant 2 : i32
    %10 = vector.broadcast %c2_i32 : i32 to vector<8x128xi32>
    %11 = arith.muli %7, %10 : vector<8x128xi32>
    %12 = vector.broadcast %9 : i32 to vector<8x128xi32>
    %13 = arith.addi %11, %12 : vector<8x128xi32>
    %c16_i32 = arith.constant 16 : i32
    %14 = vector.broadcast %c16_i32 : i32 to vector<8x128xi32>
    %15 = arith.shrsi %13, %14 : vector<8x128xi32>
    %c65535_i32 = arith.constant 65535 : i32
    %16 = vector.broadcast %c65535_i32 : i32 to vector<8x128xi32>
    %17 = arith.andi %15, %16 : vector<8x128xi32>
    %18 = arith.xori %13, %17 : vector<8x128xi32>
    %c2146121005_i32 = arith.constant 2146121005 : i32
    %19 = vector.broadcast %c2146121005_i32 : i32 to vector<8x128xi32>
    %20 = arith.muli %18, %19 : vector<8x128xi32>
    %c15_i32 = arith.constant 15 : i32
    %21 = vector.broadcast %c15_i32 : i32 to vector<8x128xi32>
    %22 = arith.shrsi %20, %21 : vector<8x128xi32>
    %c131071_i32 = arith.constant 131071 : i32
    %23 = vector.broadcast %c131071_i32 : i32 to vector<8x128xi32>
    %24 = arith.andi %22, %23 : vector<8x128xi32>
    %25 = arith.xori %20, %24 : vector<8x128xi32>
    %c-2073254261_i32 = arith.constant -2073254261 : i32
    %26 = vector.broadcast %c-2073254261_i32 : i32 to vector<8x128xi32>
    %27 = arith.muli %25, %26 : vector<8x128xi32>
    %c16_i32_0 = arith.constant 16 : i32
    %28 = vector.broadcast %c16_i32_0 : i32 to vector<8x128xi32>
    %29 = arith.shrsi %27, %28 : vector<8x128xi32>
    %c65535_i32_1 = arith.constant 65535 : i32
    %30 = vector.broadcast %c65535_i32_1 : i32 to vector<8x128xi32>
    %31 = arith.andi %29, %30 : vector<8x128xi32>
    %32 = arith.xori %27, %31 : vector<8x128xi32>
    %c1_i32 = arith.constant 1 : i32
    %33 = vector.broadcast %c1_i32 : i32 to vector<8x128xi32>
    %34 = arith.addi %13, %33 : vector<8x128xi32>
    %c16_i32_2 = arith.constant 16 : i32
    %35 = vector.broadcast %c16_i32_2 : i32 to vector<8x128xi32>
    %36 = arith.shrsi %34, %35 : vector<8x128xi32>
    %c65535_i32_3 = arith.constant 65535 : i32
    %37 = vector.broadcast %c65535_i32_3 : i32 to vector<8x128xi32>
    %38 = arith.andi %36, %37 : vector<8x128xi32>
    %39 = arith.xori %34, %38 : vector<8x128xi32>
    %c2146121005_i32_4 = arith.constant 2146121005 : i32
    %40 = vector.broadcast %c2146121005_i32_4 : i32 to vector<8x128xi32>
    %41 = arith.muli %39, %40 : vector<8x128xi32>
    %c15_i32_5 = arith.constant 15 : i32
    %42 = vector.broadcast %c15_i32_5 : i32 to vector<8x128xi32>
    %43 = arith.shrsi %41, %42 : vector<8x128xi32>
    %c131071_i32_6 = arith.constant 131071 : i32
    %44 = vector.broadcast %c131071_i32_6 : i32 to vector<8x128xi32>
    %45 = arith.andi %43, %44 : vector<8x128xi32>
    %46 = arith.xori %41, %45 : vector<8x128xi32>
    %c-2073254261_i32_7 = arith.constant -2073254261 : i32
    %47 = vector.broadcast %c-2073254261_i32_7 : i32 to vector<8x128xi32>
    %48 = arith.muli %46, %47 : vector<8x128xi32>
    %c16_i32_8 = arith.constant 16 : i32
    %49 = vector.broadcast %c16_i32_8 : i32 to vector<8x128xi32>
    %50 = arith.shrsi %48, %49 : vector<8x128xi32>
    %c65535_i32_9 = arith.constant 65535 : i32
    %51 = vector.broadcast %c65535_i32_9 : i32 to vector<8x128xi32>
    %52 = arith.andi %50, %51 : vector<8x128xi32>
    %53 = arith.xori %48, %52 : vector<8x128xi32>
    %c65535_i32_10 = arith.constant 65535 : i32
    %54 = vector.broadcast %c65535_i32_10 : i32 to vector<8x128xi32>
    %55 = arith.andi %32, %54 : vector<8x128xi32>
    %c65535_i32_11 = arith.constant 65535 : i32
    %56 = vector.broadcast %c65535_i32_11 : i32 to vector<8x128xi32>
    %57 = arith.andi %53, %56 : vector<8x128xi32>
    %58 = arith.addi %55, %57 : vector<8x128xi32>
    %c16_i32_12 = arith.constant 16 : i32
    %59 = vector.broadcast %c16_i32_12 : i32 to vector<8x128xi32>
    %60 = arith.shrsi %32, %59 : vector<8x128xi32>
    %c65535_i32_13 = arith.constant 65535 : i32
    %61 = vector.broadcast %c65535_i32_13 : i32 to vector<8x128xi32>
    %62 = arith.andi %60, %61 : vector<8x128xi32>
    %63 = arith.addi %58, %62 : vector<8x128xi32>
    %c16_i32_14 = arith.constant 16 : i32
    %64 = vector.broadcast %c16_i32_14 : i32 to vector<8x128xi32>
    %65 = arith.shrsi %53, %64 : vector<8x128xi32>
    %c65535_i32_15 = arith.constant 65535 : i32
    %66 = vector.broadcast %c65535_i32_15 : i32 to vector<8x128xi32>
    %67 = arith.andi %65, %66 : vector<8x128xi32>
    %68 = arith.addi %63, %67 : vector<8x128xi32>
    %69 = arith.sitofp %68 : vector<8x128xi32> to vector<8x128xf32>
    %cst = arith.constant 1.52587891E-5 : f32
    %70 = vector.broadcast %cst : f32 to vector<8x128xf32>
    %71 = arith.mulf %69, %70 : vector<8x128xf32>
    %cst_16 = arith.constant 2.000000e+00 : f32
    %72 = vector.broadcast %cst_16 : f32 to vector<8x128xf32>
    %73 = arith.subf %71, %72 : vector<8x128xf32>
    %cst_17 = arith.constant 1.73205078 : f32
    %74 = vector.broadcast %cst_17 : f32 to vector<8x128xf32>
    %75 = arith.mulf %73, %74 : vector<8x128xf32>
    %cst_18 = arith.constant 0.00999999977 : f32
    %76 = vector.broadcast %cst_18 : f32 to vector<8x128xf32>
    %77 = arith.mulf %75, %76 : vector<8x128xf32>
    %cst_19 = arith.constant 0.000000e+00 : f32
    %cst_20 = arith.constant 5.000000e-02 : f32
    %78 = arith.subf %cst_19, %cst_20 : f32
    %cst_21 = arith.constant 5.000000e-02 : f32
    %79 = vector.broadcast %78 : f32 to vector<8x128xf32>
    %80 = arith.maximumf %79, %77 : vector<8x128xf32>
    %81 = vector.broadcast %cst_21 : f32 to vector<8x128xf32>
    %82 = arith.minimumf %81, %80 : vector<8x128xf32>
    %c0_22 = arith.constant 0 : index
    %c0_23 = arith.constant 0 : index
    %83 = vector.load %arg2[%c0_22, %c0_23] : memref<8x128xf32, #tpu.memory_space<vmem>>, vector<8x128xf32>
    %84 = arith.addf %83, %82 : vector<8x128xf32>
    %c0_24 = arith.constant 0 : index
    %c0_25 = arith.constant 0 : index
    %85 = vector.load %arg3[%c0_24, %c0_25] : memref<8x128xf32, #tpu.memory_space<vmem>>, vector<8x128xf32>
    tpu.vector_store %arg3[%c0_24, %c0_25], %84 {strides = array<i32>} : memref<8x128xf32, #tpu.memory_space<vmem>>, vector<8x128xf32>,
    return
  }
  func.func @transform_0(%arg0: i32) -> i32 {
    %c0_i32 = arith.constant 0 : i32
    %c0_i32_0 = arith.constant 0 : i32
    return %c0_i32 : i32
  }
  func.func @transform_1(%arg0: i32) -> (i32, i32) {
    %c0_i32 = arith.constant 0 : i32
    %c0_i32_0 = arith.constant 0 : i32
    return %arg0, %c0_i32 : i32, i32
  }
  func.func @transform_2(%arg0: i32) -> (i32, i32) {
    %c0_i32 = arith.constant 0 : i32
    %c0_i32_0 = arith.constant 0 : i32
    return %arg0, %c0_i32 : i32, i32
  }
}

</mosaic_0001>

<llo_original>
// kernel: tpu_custom_call.1
$region0: #{tpu_custom_call.1}
  #allocation0 [shape = 'u32[]', space=smem, size = 0x4, offset = 0x4, fixed_abs, tag = 'smem constant byte address 0x4 - core index']
  #allocation1 [shape = 'u32[72,128]{1,0:T(1,128)}', space=vmem, size = 0x9000, scoped, tag = 'internal scratch']
  #allocation2 [shape = 's32[1]{0:T(128)S(6)}', space=smem, size = 0x200, scoped, tag = 'scoped memory for tpu_custom_call.1']
  %s0 = inlined_call_operand.<no memory space> [shape: s32[1], index: 0, kind: input, shape index: {}]
  %s1 = inlined_call_operand.hbm [shape: f32[8,128], index: 1, kind: input, shape index: {}]
  %s2 = inlined_call_operand.hbm [shape: f32[8,128], index: 2, kind: output, shape index: {}]
  %s3 = sld [smem:[#allocation0]]
  $region22: #{tpu_custom_call.1} parent=0
    _
  %s5 = ssub.s32 1, %s3
  %s6 = scalar_select 0, %s5, %s3
  %7 = sst [smem:[#allocation2]] %s0
  $region1: #{tpu_custom_call.1} parent=0
    #allocation3 [shape = 'u8[4096]{0}', space=vmem, size = 0x1000, scoped, tag = 'input window, operand 1, single buffered']
    #allocation4 [shape = 's32[1]{0}', space=sflag, size = 0x4, scoped, tag = 'scoped memory for tpu_custom_call.1']
    #allocation5 [shape = 's32[1]{0}', space=sflag, size = 0x4, scoped, tag = 'scoped memory for tpu_custom_call.1']
    #allocation6 [shape = 'u8[4096]{0}', space=vmem, size = 0x1000, scoped, tag = 'output window, operand 0, single buffered']
    %8 = vsyncpa [#allocation4], 0
    %9 = vsyncpa [#allocation5], 0
    // Predicated region
    $region2: #{tpu_custom_call.1} parent=1 // pred_check
      _
    $region3: #{tpu_custom_call.1} parent=1 // pred_check_branch
      %11 = sbr.rel (0) target = $region5
    $region4: #{tpu_custom_call.1} parent=1 // pred_region
      _
    $region5: #{tpu_custom_call.1} parent=1 // pred_fallthru
      _
    // Predicated region
    $region6: #{tpu_custom_call.1} parent=1 // pred_check
      _
    $region7: #{tpu_custom_call.1} parent=1 // pred_check_branch
      %13 = sbr.rel (0) target = $region9
    $region8: #{tpu_custom_call.1} parent=1 // pred_region
      %15 = vsyncadd [#allocation4], 0
      %s17 = sshll.u32 %s1, 4
      %s18 = int_to_ptr.hbm [resolvable:$true] %s17
      %s19 = sshll.u32 [#allocation3], 4
      %s20 = int_to_ptr.vmem [resolvable:$true] %s19
      %22 = dma.hbm_to_vmem [thread:$0]  %s18, 128, %s20, [#allocation4]
    $region9: #{tpu_custom_call.1} parent=1 // pred_fallthru
      _
    // Predicated region
    $region10: #{tpu_custom_call.1} parent=1 // pred_check
      _
    $region11: #{tpu_custom_call.1} parent=1 // pred_check_branch
      %24 = sbr.rel (0) target = $region13
    $region12: #{tpu_custom_call.1} parent=1 // pred_region
      %26 = dma.done [#allocation4], 128
    $region13: #{tpu_custom_call.1} parent=1 // pred_fallthru
      _
    %v27 = vlaneseq
    %v28 = vshrl.u32 %v27, 7
    %v29 = vlaneseq
    %v30 = vand.u32 %v29, 127
    %s31 = smul.u32 0, 8
    %v32 = vstv %s31
    %v33 = vadd.s32 %v32, %v28
    %v34 = vmul.u32 %v33, 128
    %v35 = vadd.s32 %v34, %v30
    %s36 = sld [smem:[#allocation2]]
    %s37 = smul.u32 %s36, 2654435769
    %v38 = vmul.u32 %v35, 2
    %v39 = vstv %s37
    %v40 = vadd.s32 %v38, %v39
    %v41 = vshra.s32 %v40, 16
    %v42 = vand.u32 %v41, 65535
    %v43 = vxor.u32 %v40, %v42
    %v44 = vmul.u32 %v43, 2146121005
    %v45 = vshra.s32 %v44, 15
    %v46 = vand.u32 %v45, 131071
    %v47 = vxor.u32 %v44, %v46
    %v48 = vmul.u32 %v47, 2221713035
    %v49 = vshra.s32 %v48, 16
    %v50 = vand.u32 %v49, 65535
    %v51 = vxor.u32 %v48, %v50
    %v52 = vadd.s32 %v40, 1
    %v53 = vshra.s32 %v52, 16
    %v54 = vand.u32 %v53, 65535
    %v55 = vxor.u32 %v52, %v54
    %v56 = vmul.u32 %v55, 2146121005
    %v57 = vshra.s32 %v56, 15
    %v58 = vand.u32 %v57, 131071
    %v59 = vxor.u32 %v56, %v58
    %v60 = vmul.u32 %v59, 2221713035
    %v61 = vshra.s32 %v60, 16
    %v62 = vand.u32 %v61, 65535
    %v63 = vxor.u32 %v60, %v62
    %v64 = vand.u32 %v51, 65535
    %v65 = vand.u32 %v63, 65535
    %v66 = vadd.s32 %v64, %v65
    %v67 = vshra.s32 %v51, 16
    %v68 = vand.u32 %v67, 65535
    %v69 = vadd.s32 %v66, %v68
    %v70 = vshra.s32 %v63, 16
    %v71 = vand.u32 %v70, 65535
    %v72 = vadd.s32 %v69, %v71
    %v73 = vcvt.s32.f32 %v72
    %v74 = vmul.f32 %v73, 1.5258789e-05
    %v75 = vsub.f32 %v74, 2.0
    %v76 = vmul.f32 %v75, 1.7320508
    %v77 = vmul.f32 %v76, 0.01
    %v78 = vmax.f32 %v77, -0.05
    %v79 = vmin.f32 %v78, 0.05
    %v80 = vld [vmem:[#allocation3] sm:$0xff]
    %v81 = vadd.f32 %v80, %v79
    %82 = vst [vmem:[#allocation6] sm:$0xff] %v81
    // Predicated region
    $region14: #{tpu_custom_call.1} parent=1 // pred_check
      _
    $region15: #{tpu_custom_call.1} parent=1 // pred_check_branch
      %84 = sbr.rel (0) target = $region17
    $region16: #{tpu_custom_call.1} parent=1 // pred_region
      %86 = vsyncadd [#allocation5], 0
      %s88 = sshll.u32 [#allocation6], 4
      %s89 = int_to_ptr.vmem [resolvable:$true] %s88
      %s90 = sshll.u32 %s2, 4
      %s91 = int_to_ptr.hbm [resolvable:$true] %s90
      %93 = dma.vmem_to_hbm [thread:$0]  %s89, 128, %s91, [#allocation5]
    $region17: #{tpu_custom_call.1} parent=1 // pred_fallthru
      _
    // Predicated region
    $region18: #{tpu_custom_call.1} parent=1 // pred_check
      _
    $region19: #{tpu_custom_call.1} parent=1 // pred_check_branch
      %95 = sbr.rel (0) target = $region21
    $region20: #{tpu_custom_call.1} parent=1 // pred_region
      %97 = dma.done [#allocation5], 128
    $region21: #{tpu_custom_call.1} parent=1 // pred_fallthru
      _
    %98 = vsyncpa [#allocation4], 1
    %99 = vsyncpa [#allocation5], 1

</llo_original>
